<compile_context>
chip_gen: v6e
topology: v6e:2x2x1
jax: 0.10.0
libtpu: 0.0.40
codegen_flags: <defaults>
</compile_context>

<pallas_src>
import jax
import jax.numpy as jnp
from jax.experimental import pallas as pl
from jax.experimental.pallas import tpu as pltpu

LANE = 128
SUBLANE = 8
NEG_BIG = -1e30  # bias for padded action rows -> exp underflows to exactly 0


def _round_up(n, m):
    return ((n + m - 1) // m) * m


def _next_pow2(n):
    return 1 << (max(int(n), 1) - 1).bit_length()


def _pick_tile(b_pad, batch_tile):
    # >= 2 grid steps when possible (v7x megacore), each tile a multiple of 128 lanes.
    if b_pad >= 2 * LANE:
        return min(batch_tile, b_pad // 2)
    return b_pad  # single block equal to the full (small) array -> always a legal block


def _actor_kernel(x_ref, w1_ref, b1_ref, w2t_ref, b2_ref, o_ref):
    # x_ref:  [TB, D]    f32   (cast to bf16 on-chip)
    # w1_ref: [D, H]     bf16  (resident)
    # b1_ref: [1, H]     f32   (resident)
    # w2t_ref:[A_pad, H] bf16  (resident, padded rows are zero)
    # b2_ref: [A_pad, 1] f32   (resident, padded rows = NEG_BIG)
    # o_ref:  [A_pad, TB] f32  (transposed, lane-dense probabilities)
    x = x_ref[...].astype(jnp.bfloat16)                                    # [TB, D]
    h = jnp.dot(x, w1_ref[...], preferred_element_type=jnp.float32)       # [TB, H] f32
    h = jnp.maximum(h + b1_ref[...], 0.0)

    # logits^T = W2^T @ h^T  (contract hidden dim of both operands) -> [A_pad, TB]
    logits_t = jnp.einsum(
        "ah,th->at", w2t_ref[...], h.astype(jnp.bfloat16),
        preferred_element_type=jnp.float32) + b2_ref[...]

    # Numerically stable softmax over the (sublane) action axis, all f32.
    m = jnp.max(logits_t, axis=0, keepdims=True)                           # [1, TB]
    e = jnp.exp(logits_t - m)                                              # [A_pad, TB]
    s = jnp.sum(e, axis=0, keepdims=True)                                  # [1, TB]
    o_ref[...] = (e * pl.reciprocal(s, approx=True)).astype(o_ref.dtype)


def make_jit_fast_strategic_actor(w1, b1, w2, b2, *, batch_tile=512):
    """Returns fn(state[B, D]) -> probs[B, A]; weights baked in as jit constants."""
    d, h = w1.shape
    h2, a = w2.shape
    assert h2 == h and b1.shape == (h,) and b2.shape == (a,)

    a_pad = _round_up(a, SUBLANE)
    batch_tile = max(LANE, _next_pow2(batch_tile))

    w1_b = jnp.asarray(w1, jnp.float32).astype(jnp.bfloat16)               # [D, H]
    b1_f = jnp.asarray(b1, jnp.float32).reshape(1, h)                      # [1, H]
    w2t_b = (jnp.zeros((a_pad, h), jnp.float32)
             .at[:a, :].set(jnp.asarray(w2, jnp.float32).T)
             .astype(jnp.bfloat16))                                        # [A_pad, H]
    b2_f = (jnp.full((a_pad, 1), NEG_BIG, jnp.float32)
            .at[:a, 0].set(jnp.asarray(b2, jnp.float32)))                  # [A_pad, 1]

    @jax.jit
    def _fwd_padded(state_pad):                                            # [B_pad, D] f32
        b_pad = state_pad.shape[0]
        tb = _pick_tile(b_pad, batch_tile)
        probs_t = pl.pallas_call(
            _actor_kernel,
            out_shape=jax.ShapeDtypeStruct((a_pad, b_pad), jnp.float32),
            grid=(b_pad // tb,),
            in_specs=[
                pl.BlockSpec((tb, d), lambda i: (i, 0)),       # state stream
                pl.BlockSpec((d, h), lambda i: (0, 0)),        # W1, resident
                pl.BlockSpec((1, h), lambda i: (0, 0)),        # b1, resident f32
                pl.BlockSpec((a_pad, h), lambda i: (0, 0)),    # W2^T, resident
                pl.BlockSpec((a_pad, 1), lambda i: (0, 0)),    # b2 column, resident f32
            ],
            out_specs=pl.BlockSpec((a_pad, tb), lambda i: (0, i)),  # lane-dense stores
            compiler_params=pltpu.CompilerParams(
                dimension_semantics=("parallel",)),
        )(state_pad, w1_b, b1_f, w2t_b, b2_f)
        return probs_t[:a, :].T                                            # [B_pad, A]

    def forward(state):
        bsz = state.shape[0]
        b_pad = max(SUBLANE, _next_pow2(bsz))  # fixed pow2 buckets -> few jit variants
        x = jnp.asarray(state, jnp.float32)
        if b_pad != bsz:
            x = jnp.pad(x, ((0, b_pad - bsz), (0, 0)))
        out = _fwd_padded(x)
        return out if b_pad == bsz else out[:bsz]

    return forward


def xavier_uniform(key, fan_in, fan_out, dtype=jnp.float32):
    # Matches torch.nn.init.xavier_uniform_ (gain=1): U(-a, a), a = sqrt(6/(fan_in+fan_out))
    lim = (6.0 / (fan_in + fan_out)) ** 0.5
    return jax.random.uniform(key, (fan_in, fan_out), dtype=dtype, minval=-lim, maxval=lim)


if __name__ == "__main__":
    INPUT_DIM, HIDDEN_DIM, ACTION_DIM = 16, 64, 3

    key = jax.random.PRNGKey(0)
    k_s1, k_s2, k_w1, k_w2 = jax.random.split(key, 4)

    w1 = xavier_uniform(k_w1, INPUT_DIM, HIDDEN_DIM)
    b1 = jnp.zeros((HIDDEN_DIM,), dtype=jnp.float32)
    w2 = xavier_uniform(k_w2, HIDDEN_DIM, ACTION_DIM)
    b2 = jnp.zeros((ACTION_DIM,), dtype=jnp.float32)

    actor = make_jit_fast_strategic_actor(w1, b1, w2, b2)

    def ref_f32(x):  # what the PyTorch module computes
        hh = jnp.maximum(x @ w1 + b1, 0.0)
        return jax.nn.softmax(hh @ w2 + b2, axis=-1)

    def ref_bf16(x):  # matches the kernel's bf16-matmul / f32-accumulate math
        hh = jnp.maximum(
            jnp.dot(x.astype(jnp.bfloat16), w1.astype(jnp.bfloat16),
                    preferred_element_type=jnp.float32) + b1, 0.0)
        lg = jnp.dot(hh.astype(jnp.bfloat16), w2.astype(jnp.bfloat16),
                     preferred_element_type=jnp.float32) + b2
        return jax.nn.softmax(lg, axis=-1)

    def check(state):
        bsz = state.shape[0]
        probs = jax.block_until_ready(actor(state))
        assert probs.shape == (bsz, ACTION_DIM)
        assert jnp.allclose(probs, ref_bf16(state), atol=5e-3), "mismatch vs bf16 reference"
        assert jnp.allclose(probs, ref_f32(state), atol=3e-2), "mismatch vs f32 reference"
        assert jnp.allclose(jnp.sum(probs, axis=-1), 1.0, atol=5e-3)

    # Small batch (single grid step, no padding needed).
    check(jax.random.normal(k_s1, (8, INPUT_DIM), dtype=jnp.float32))
    # Larger, non-power-of-two batch (exercises bucketing/padding and a 2-step grid).
    check(jax.random.normal(k_s2, (300, INPUT_DIM), dtype=jnp.float32))

    print("KERNEL_OK")
</pallas_src>

<mosaic_0001>
module attributes {stable_mosaic.version = 11 : i64} {
  func.func @_actor_kernel(%arg0: i32, %arg1: memref<8x16xf32, #tpu.memory_space<vmem>>, %arg2: memref<16x64xbf16, #tpu.memory_space<vmem>>, %arg3: memref<1x64xf32, #tpu.memory_space<vmem>>, %arg4: memref<8x64xbf16, #tpu.memory_space<vmem>>, %arg5: memref<8x1xf32, #tpu.memory_space<vmem>>, %arg6: memref<8x8xf32, #tpu.memory_space<vmem>>) attributes {dimension_semantics = [#tpu.dimension_semantics<parallel>], iteration_bounds = array<i64: 1>, scalar_prefetch = 0 : i64, scratch_operands = 0 : i64, tpu.core_type = #tpu.core_type<tc>, window_params = [{transform_indices = @transform_0, window_bounds = array<i64: 8, 16>}, {pipeline_mode = #tpu.pipeline_mode<synchronous>, transform_indices = @transform_1, window_bounds = array<i64: 16, 64>}, {pipeline_mode = #tpu.pipeline_mode<synchronous>, transform_indices = @transform_2, window_bounds = array<i64: 1, 64>}, {pipeline_mode = #tpu.pipeline_mode<synchronous>, transform_indices = @transform_3, window_bounds = array<i64: 8, 64>}, {pipeline_mode = #tpu.pipeline_mode<synchronous>, transform_indices = @transform_4, window_bounds = array<i64: 8, 1>}, {transform_indices = @transform_5, window_bounds = array<i64: 8, 8>}]} {
    %c0 = arith.constant 0 : index
    %c0_0 = arith.constant 0 : index
    %0 = vector.load %arg1[%c0, %c0_0] : memref<8x16xf32, #tpu.memory_space<vmem>>, vector<8x16xf32>
    %1 = arith.truncf %0 : vector<8x16xf32> to vector<8x16xbf16>
    %c0_1 = arith.constant 0 : index
    %c0_2 = arith.constant 0 : index
    %2 = vector.load %arg2[%c0_1, %c0_2] : memref<16x64xbf16, #tpu.memory_space<vmem>>, vector<16x64xbf16>
    %cst = arith.constant dense<0.000000e+00> : vector<8x64xf32>
    %3 = tpu.matmul %1, %2, %cst {dimension_numbers = #tpu.dot_dimension_numbers<[1], [0], [0], [1], [0, 0, 1, 1], [], []>} : vector<8x16xbf16>, vector<16x64xbf16>, vector<8x64xf32> -> vector<8x64xf32>
    %c0_3 = arith.constant 0 : index
    %c0_4 = arith.constant 0 : index
    %4 = vector.load %arg3[%c0_3, %c0_4] : memref<1x64xf32, #tpu.memory_space<vmem>>, vector<1x64xf32>
    %5 = vector.broadcast %4 : vector<1x64xf32> to vector<8x64xf32>
    %6 = arith.addf %3, %5 : vector<8x64xf32>
    %cst_5 = arith.constant 0.000000e+00 : f32
    %7 = vector.broadcast %cst_5 : f32 to vector<8x64xf32>
    %8 = arith.maximumf %6, %7 : vector<8x64xf32>
    %c0_6 = arith.constant 0 : index
    %c0_7 = arith.constant 0 : index
    %9 = vector.load %arg4[%c0_6, %c0_7] : memref<8x64xbf16, #tpu.memory_space<vmem>>, vector<8x64xbf16>
    %10 = arith.truncf %8 : vector<8x64xf32> to vector<8x64xbf16>
    "tpu.trace_start"() <{level = 10 : i32, message = "ah,th->at"}> : () -> ()
    %cst_8 = arith.constant dense<0.000000e+00> : vector<8x8xf32>
    %11 = tpu.matmul %9, %10, %cst_8 {dimension_numbers = #tpu.dot_dimension_numbers<[1], [1], [0], [0], [0, 0, 1, 0], [], []>} : vector<8x64xbf16>, vector<8x64xbf16>, vector<8x8xf32> -> vector<8x8xf32>
    "tpu.trace_stop"() : () -> ()
    %c0_9 = arith.constant 0 : index
    %c0_10 = arith.constant 0 : index
    %12 = vector.load %arg5[%c0_9, %c0_10] : memref<8x1xf32, #tpu.memory_space<vmem>>, vector<8x1xf32>
    %13 = vector.broadcast %12 : vector<8x1xf32> to vector<8x8xf32>
    %14 = arith.addf %11, %13 : vector<8x8xf32>
    %cst_11 = arith.constant dense<0xFF800000> : vector<8xf32>
    %15 = vector.multi_reduction <maximumf>, %14, %cst_11 [0] : vector<8x8xf32> to vector<8xf32>
    %16 = vector.shape_cast %15 : vector<8xf32> to vector<1x8xf32>
    %17 = vector.broadcast %16 : vector<1x8xf32> to vector<8x8xf32>
    %18 = arith.subf %14, %17 : vector<8x8xf32>
    %19 = math.exp %18 : vector<8x8xf32>
    %cst_12 = arith.constant dense<0.000000e+00> : vector<8xf32>
    %20 = vector.multi_reduction <add>, %19, %cst_12 [0] : vector<8x8xf32> to vector<8xf32>
    %21 = vector.shape_cast %20 : vector<8xf32> to vector<1x8xf32>
    %22 = tpu.reciprocal %21 {approx = true} : vector<1x8xf32> -> vector<1x8xf32>
    %23 = vector.broadcast %22 : vector<1x8xf32> to vector<8x8xf32>
    %24 = arith.mulf %19, %23 : vector<8x8xf32>
    %c0_13 = arith.constant 0 : index
    %c0_14 = arith.constant 0 : index
    %25 = vector.load %arg6[%c0_13, %c0_14] : memref<8x8xf32, #tpu.memory_space<vmem>>, vector<8x8xf32>
    tpu.vector_store %arg6[%c0_13, %c0_14], %24 {strides = array<i32>} : memref<8x8xf32, #tpu.memory_space<vmem>>, vector<8x8xf32>,
    return
  }
  func.func @transform_0(%arg0: i32) -> (i32, i32) {
    %c0_i32 = arith.constant 0 : i32
    %c0_i32_0 = arith.constant 0 : i32
    return %arg0, %c0_i32 : i32, i32
  }
  func.func @transform_1(%arg0: i32) -> (i32, i32) {
    %c0_i32 = arith.constant 0 : i32
    %c0_i32_0 = arith.constant 0 : i32
    %c0_i32_1 = arith.constant 0 : i32
    return %c0_i32, %c0_i32_0 : i32, i32
  }
  func.func @transform_2(%arg0: i32) -> (i32, i32) {
    %c0_i32 = arith.constant 0 : i32
    %c0_i32_0 = arith.constant 0 : i32
    %c0_i32_1 = arith.constant 0 : i32
    return %c0_i32, %c0_i32_0 : i32, i32
  }
  func.func @transform_3(%arg0: i32) -> (i32, i32) {
    %c0_i32 = arith.constant 0 : i32
    %c0_i32_0 = arith.constant 0 : i32
    %c0_i32_1 = arith.constant 0 : i32
    return %c0_i32, %c0_i32_0 : i32, i32
  }
  func.func @transform_4(%arg0: i32) -> (i32, i32) {
    %c0_i32 = arith.constant 0 : i32
    %c0_i32_0 = arith.constant 0 : i32
    %c0_i32_1 = arith.constant 0 : i32
    return %c0_i32, %c0_i32_0 : i32, i32
  }
  func.func @transform_5(%arg0: i32) -> (i32, i32) {
    %c0_i32 = arith.constant 0 : i32
    %c0_i32_0 = arith.constant 0 : i32
    return %c0_i32, %arg0 : i32, i32
  }
}

</mosaic_0001>

<llo_original>
// kernel: _fwd_padded.1
$region0: #{_fwd_padded.1}
  #allocation0 [shape = 'u32[]', space=smem, size = 0x4, offset = 0x4, fixed_abs, tag = 'smem constant byte address 0x4 - core index']
  #allocation1 [shape = 'u32[144,128]{1,0:T(1,128)}', space=vmem, size = 0x12000, scoped, tag = 'internal scratch']
  %s0 = inlined_call_operand.hbm [shape: f32[8,16], index: 0, kind: input, shape index: {}]
  %s1 = inlined_call_operand.hbm [shape: bf16[16,64], index: 1, kind: input, shape index: {}]
  %s2 = inlined_call_operand.vmem [shape: f32[1,64], index: 2, kind: input, shape index: {}]
  %s3 = inlined_call_operand.hbm [shape: bf16[8,64], index: 3, kind: input, shape index: {}]
  %s4 = inlined_call_operand.vmem [shape: f32[8,1], index: 4, kind: input, shape index: {}]
  %s5 = inlined_call_operand.vmem [shape: f32[8,8], index: 5, kind: output, shape index: {}]
  %s6 = sld [smem:[#allocation0]]
  $region42: #{_fwd_padded.1} parent=0
    _
  %s8 = ssub.s32 1, %s6
  %s9 = scalar_select 0, %s8, %s6
  $region1: #{_fwd_padded.1} parent=0
    #allocation2 [shape = 'u8[4096]{0}', space=vmem, size = 0x1000, scoped, tag = 'input window, operand 0, single buffered']
    #allocation3 [shape = 's32[1]{0}', space=sflag, size = 0x4, scoped, tag = 'scoped memory for _fwd_padded.1']
    #allocation4 [shape = 'u8[4096]{0}', space=vmem, size = 0x1000, scoped, tag = 'input window, operand 1, single buffered']
    #allocation5 [shape = 's32[1]{0}', space=sflag, size = 0x4, scoped, tag = 'scoped memory for _fwd_padded.1']
    #allocation6 [shape = 'u8[2048]{0}', space=vmem, size = 0x800, scoped, tag = 'input window, operand 3, single buffered']
    %10 = vsyncpa [#allocation3], 0
    %11 = vsyncpa [#allocation5], 0
    // Predicated region
    $region2: #{_fwd_padded.1} parent=1 // pred_check
      _
    $region3: #{_fwd_padded.1} parent=1 // pred_check_branch
      %13 = sbr.rel (0) target = $region5
    $region4: #{_fwd_padded.1} parent=1 // pred_region
      %s15 = ssub.s32 128, 128
      %16 = vsyncadd [#allocation3], %s15
      %s18 = sshll.u32 [#allocation2], 4
      %s19 = int_to_ptr.vmem [resolvable:$true] %s18
      %21 = dma.hbm_to_vmem [thread:$0]  %s0, 128, %s19, [#allocation3]
    $region5: #{_fwd_padded.1} parent=1 // pred_fallthru
      _
    // Predicated region
    $region6: #{_fwd_padded.1} parent=1 // pred_check
      _
    $region7: #{_fwd_padded.1} parent=1 // pred_check_branch
      %23 = sbr.rel (0) target = $region9
    $region8: #{_fwd_padded.1} parent=1 // pred_region
      %s25 = ssub.s32 128, 128
      %26 = vsyncadd [#allocation5], %s25
      %s27 = sshll.u32 [#allocation4], 4
      %s28 = int_to_ptr.vmem [resolvable:$true] %s27
      %33 = dma.hbm_to_vmem [thread:$0]  %s1, 128, %s28, [#allocation5], 64, 64, 4
    $region9: #{_fwd_padded.1} parent=1 // pred_fallthru
      _
    // Predicated region
    $region10: #{_fwd_padded.1} parent=1 // pred_check
      _
    $region11: #{_fwd_padded.1} parent=1 // pred_check_branch
      %35 = sbr.rel (0) target = $region13
    $region12: #{_fwd_padded.1} parent=1 // pred_region
      _
    $region13: #{_fwd_padded.1} parent=1 // pred_fallthru
      _
    // Predicated region
    $region14: #{_fwd_padded.1} parent=1 // pred_check
      _
    $region15: #{_fwd_padded.1} parent=1 // pred_check_branch
      %37 = sbr.rel (0) target = $region17
    $region16: #{_fwd_padded.1} parent=1 // pred_region
      %s39 = ssub.s32 64, 64
      %40 = vsyncadd [#allocation5], %s39
      %s42 = sshll.u32 [#allocation6], 4
      %s43 = int_to_ptr.vmem [resolvable:$true] %s42
      %45 = dma.hbm_to_vmem [thread:$0]  %s3, 64, %s43, [#allocation5]
    $region17: #{_fwd_padded.1} parent=1 // pred_fallthru
      _
    // Predicated region
    $region18: #{_fwd_padded.1} parent=1 // pred_check
      _
    $region19: #{_fwd_padded.1} parent=1 // pred_check_branch
      %47 = sbr.rel (0) target = $region21
    $region20: #{_fwd_padded.1} parent=1 // pred_region
      _
    $region21: #{_fwd_padded.1} parent=1 // pred_fallthru
      _
    // Predicated region
    $region22: #{_fwd_padded.1} parent=1 // pred_check
      _
    $region23: #{_fwd_padded.1} parent=1 // pred_check_branch
      %49 = sbr.rel (0) target = $region25
    $region24: #{_fwd_padded.1} parent=1 // pred_region
      %50 = dma.done [#allocation3], 128
    $region25: #{_fwd_padded.1} parent=1 // pred_fallthru
      _
    // Predicated region
    $region26: #{_fwd_padded.1} parent=1 // pred_check
      _
    $region27: #{_fwd_padded.1} parent=1 // pred_check_branch
      %52 = sbr.rel (0) target = $region29
    $region28: #{_fwd_padded.1} parent=1 // pred_region
      %53 = dma.done [#allocation5], 128
    $region29: #{_fwd_padded.1} parent=1 // pred_fallthru
      _
    // Predicated region
    $region30: #{_fwd_padded.1} parent=1 // pred_check
      _
    $region31: #{_fwd_padded.1} parent=1 // pred_check_branch
      %55 = sbr.rel (0) target = $region33
    $region32: #{_fwd_padded.1} parent=1 // pred_region
      %56 = dma.done [#allocation5], 64
    $region33: #{_fwd_padded.1} parent=1 // pred_fallthru
      _
    %v58 = vld [vmem:[#allocation2] sm:$0xff]
    %v59 = vpack.c.bf16 %v58, %v58
    %v60 = vld [vmem:[#allocation4] sm:$0xf]
    %v61 = vld [vmem:[#allocation4 + $0x4] sm:$0xf]
    %v62 = vld [vmem:[%s2] sm:$0x1]
    %v64 = vlaneseq
    %v65 = vshrl.u32 %v64, 7
    %v66 = vsub.s32 0, %v65
    %v67 = vrot.slane %v62, %v66
    %v71 = vunpack.c.l.b16 %v60
    %v72 = vunpack.c.l.b16 %v61
    %v73 = vpack.c.b16 %v72, %v71
    %vm75 = vcmask 130048
    %v77 = vsel %vm75, %v59, 0
    %79 = vmatprep.subr.bf16.mxu0 0
    %80 = vmatpush1.bf16.msra.mxu0 0
    %81 = vmatprep.subr.bf16.mxu0 0
    %82 = vmatpush1.bf16.msra.mxu0 0
    %83 = vmatprep.subr.bf16.mxu0 0
    %84 = vmatpush1.bf16.msra.mxu0 0
    %85 = vmatprep.subr.bf16.mxu0 0
    %86 = vmatpush1.bf16.msra.mxu0 0
    %87 = vmatprep.subr.bf16.mxu0 0
    %88 = vmatpush1.bf16.msra.mxu0 0
    %89 = vmatprep.subr.bf16.mxu0 0
    %90 = vmatpush1.bf16.msra.mxu0 0
    %91 = vmatprep.subr.bf16.mxu0 0
    %92 = vmatpush1.bf16.msra.mxu0 0
    %93 = vmatprep.subr.bf16.mxu0 0
    %94 = vmatpush1.bf16.msra.mxu0 %v73
    %95 = vmatprep.subr.bf16.mxu0 0
    %96 = vmatpush2.bf16.msra.mxu0 0
    %97 = vmatprep.subr.bf16.mxu0 0
    %98 = vmatpush2.bf16.msra.mxu0 0
    %99 = vmatprep.subr.bf16.mxu0 0
    %100 = vmatpush2.bf16.msra.mxu0 0
    %101 = vmatprep.subr.bf16.mxu0 0
    %102 = vmatpush2.bf16.msra.mxu0 0
    %103 = vmatprep.subr.bf16.mxu0 0
    %104 = vmatpush2.bf16.msra.mxu0 0
    %105 = vmatprep.subr.bf16.mxu0 0
    %106 = vmatpush2.bf16.msra.mxu0 0
    %107 = vmatprep.subr.bf16.mxu0 0
    %108 = vmatpush2.bf16.msra.mxu0 0
    %109 = vmatprep.subr.bf16.mxu0 0
    %110 = vmatpush2.bf16.msra.mxu0 0
    %111 = vmatprep.mubr.bf16.mxu0 0
    %112 = vmatmul.mubr.bf16.gmra.mxu0 %v77
    %v113 = vpop.f32.mrf.mxu0
    %v114 = vadd.f32 %v67, %v113
    %v115 = vpop.f32.mrf.mxu0
    %v116 = vpop.f32.mrf.mxu0
    %v117 = vpop.f32.mrf.mxu0
    %118 = vdwg.mxu0
    %v119 = vmax.f32 %v114, 0.0
    %v120 = vld [vmem:[#allocation6] sm:$0xf]
    %v121 = vpack.c.bf16 %v119, %v119
    %v122 = vld [vmem:[%s4] sm:$0xff]
    %124 = vset.pattern.permute.xlu0 0
    %125 = vperm.xlu0 %124, %v122
    %v126 = vpop.permute.xlu0 %125
    %vm128 = vcmask 523264
    %v130 = vsel %vm128, %v120, 0
    %v133 = vsel %vm128, %v121, 0
    %135 = vmatprep.subr.bf16.mxu0 0
    %136 = vmatpush1.bf16.xpose.msra.mxu0 0
    %137 = vmatprep.subr.bf16.mxu0 0
    %138 = vmatpush1.bf16.xpose.msra.mxu0 0
    %139 = vmatprep.subr.bf16.mxu0 0
    %140 = vmatpush1.bf16.xpose.msra.mxu0 0
    %141 = vmatprep.subr.bf16.mxu0 0
    %142 = vmatpush1.bf16.xpose.msra.mxu0 0
    %143 = vmatprep.subr.bf16.mxu0 0
    %144 = vmatpush1.bf16.xpose.msra.mxu0 0
    %145 = vmatprep.subr.bf16.mxu0 0
    %146 = vmatpush1.bf16.xpose.msra.mxu0 0
    %147 = vmatprep.subr.bf16.mxu0 0
    %148 = vmatpush1.bf16.xpose.msra.mxu0 0
    %149 = vmatprep.subr.bf16.mxu0 0
    %150 = vmatpush1.bf16.xpose.msra.mxu0 %v133
    %151 = vmatprep.subr.bf16.mxu0 0
    %152 = vmatpush2.bf16.xpose.msra.mxu0 0
    %153 = vmatprep.subr.bf16.mxu0 0
    %154 = vmatpush2.bf16.xpose.msra.mxu0 0
    %155 = vmatprep.subr.bf16.mxu0 0
    %156 = vmatpush2.bf16.xpose.msra.mxu0 0
    %157 = vmatprep.subr.bf16.mxu0 0
    %158 = vmatpush2.bf16.xpose.msra.mxu0 0
    %159 = vmatprep.subr.bf16.mxu0 0
    %160 = vmatpush2.bf16.xpose.msra.mxu0 0
    %161 = vmatprep.subr.bf16.mxu0 0
    %162 = vmatpush2.bf16.xpose.msra.mxu0 0
    %163 = vmatprep.subr.bf16.mxu0 0
    %164 = vmatpush2.bf16.xpose.msra.mxu0 0
    %165 = vmatprep.subr.bf16.mxu0 0
    %166 = vmatpush2.bf16.xpose.msra.mxu0 0
    %167 = vmatprep.mubr.bf16.mxu0 0
    %168 = vmatmul.mubr.bf16.gmra.mxu0 %v130
    %v169 = vpop.f32.mrf.mxu0
    %v170 = vadd.f32 %v126, %v169
    %v171 = vpop.f32.mrf.mxu0
    %v172 = vpop.f32.mrf.mxu0
    %v173 = vpop.f32.mrf.mxu0
    %174 = vdwg.mxu0
    %vm175 = vcmask 64512
    %v176 = vsel %vm175, %v170, -inf
    %v177 = vrot.slane %v176, 4
    %v178 = vmax.f32 %v176, %v177
    %v179 = vrot.slane %v178, 2
    %v180 = vmax.f32 %v178, %v179
    %v181 = vrot.slane %v180, 1
    %v182 = vmax.f32 %v180, %v181
    %v183 = vsub.f32 %v170, %v182
    %v184 = vmul.f32 %v183, 1.442695
    %v185 = vpow.pop %v184
    %v186 = vsel %vm175, %v185, 0.0
    %v187 = vrot.slane %v186, 4
    %v188 = vadd.f32 %v186, %v187
    %v189 = vrot.slane %v188, 2
    %v190 = vadd.f32 %v188, %v189
    %v191 = vrot.slane %v190, 1
    %v192 = vadd.f32 %v190, %v191
    %v193 = vrcp.pop %v192
    %v194 = vmul.f32 %v185, %v193
    %195 = vst.msk [vmem:[%s5] sm:$0xff] %vm175, %v194
    // Predicated region
    $region34: #{_fwd_padded.1} parent=1 // pred_check
      _
    $region35: #{_fwd_padded.1} parent=1 // pred_check_branch
      %197 = sbr.rel (0) target = $region37
    $region36: #{_fwd_padded.1} parent=1 // pred_region
      _
    $region37: #{_fwd_padded.1} parent=1 // pred_fallthru
      _
    // Predicated region
    $region38: #{_fwd_padded.1} parent=1 // pred_check
      _
    $region39: #{_fwd_padded.1} parent=1 // pred_check_branch
      %199 = sbr.rel (0) target = $region41
    $region40: #{_fwd_padded.1} parent=1 // pred_region
      _
    $region41: #{_fwd_padded.1} parent=1 // pred_fallthru
      _
    %200 = vsyncpa [#allocation3], 1
    %201 = vsyncpa [#allocation5], 1

</llo_original>
